<compile_context>
chip_gen: v6e
topology: v6e:2x2x1
jax: 0.10.0
libtpu: 0.0.40
codegen_flags: <defaults>
</compile_context>

<pallas_src>
import functools
import math

import jax
import jax.numpy as jnp
from jax.experimental import pallas as pl
from jax.experimental.pallas import tpu as pltpu


def _round_down(x, m):
    return (x // m) * m


def _bce_kernel(pred_ref, label_ref, out_ref, *, ignore_label, from_sigmoid,
                steps_per_split, blk1, valid_limit):
    """Blocks: pred/label (b_tile, blk1, 128) [dense] or (b_tile, blk1) [ragged];
    out (1, b_tile, 128) [dense] or (1, b_tile, 1) [ragged]."""
    j = pl.program_id(2)

    # Zero the VMEM-resident accumulator at the start of each (batch-block, split)
    # inner reduction loop (output block index depends only on (i, c)).
    @pl.when(j == 0)
    def _():
        out_ref[...] = jnp.zeros_like(out_ref)

    pred = pred_ref[...].astype(jnp.float32)
    label = label_ref[...].astype(jnp.float32)

    # Validity of each element along the data axis (block axis 1).  The last block
    # of a row (and fully out-of-bounds split blocks) may hang past the true
    # extent; Pallas leaves unspecified data there, which we mask to zero.
    rb = pl.program_id(1) * steps_per_split + j        # block index along axis 1
    limit_local = valid_limit - rb * blk1              # scalar
    idx1 = jax.lax.broadcasted_iota(jnp.int32, pred.shape, 1)
    valid = idx1 < limit_local

    keep = valid & (label != jnp.float32(ignore_label))
    lbl = jnp.where(keep, label, jnp.float32(0.0))

    if not from_sigmoid:
        # Numerically stable BCE-with-logits: relu(x) - x*y + log1p(exp(-|x|)).
        loss = (jnp.maximum(pred, 0.0) - pred * lbl
                + jnp.log1p(jnp.exp(-jnp.abs(pred))))
    else:
        eps = jnp.float32(1e-12)
        loss = -(jnp.log(pred + eps) * lbl
                 + jnp.log(1.0 - pred + eps) * (1.0 - lbl))

    # Zero ignored / out-of-bounds elements (also neutralizes NaN/Inf garbage).
    loss = jnp.where(keep, loss, jnp.float32(0.0))

    if loss.ndim == 3:
        # Dense path: keep the 128 lanes -> pure VPU adds + tiny sublane reduce.
        partial = jnp.sum(loss, axis=1)                      # (b_tile, 128)
    else:
        # Ragged path: full per-row reduce; one small XLU reduce per step.
        partial = jnp.sum(loss, axis=1, keepdims=True)       # (b_tile, 1)

    out_ref[...] += partial[None]


def sigmoid_bce_loss(pred, label, *, from_sigmoid=False, ignore_label=-1,
                     weight=1.0, cast_label_to_bf16=True,
                     target_block_elems=512 * 1024):
    """pred, label: N(...) float arrays (e.g. NCHW). Returns per-batch mean loss (N,)."""
    n = pred.shape[0]
    k = math.prod(pred.shape[1:])

    pred2 = pred.reshape(n, k)          # free reshape of contiguous data
    label2 = label.reshape(n, k)        # mirrors label.view(pred.size())

    # Segmentation labels are {0, 1, ignore_label}: bf16-exact, so halve their HBM
    # traffic.  (Best case: the producer already emits bf16 labels/preds so this is
    # a no-op or fuses upstream.)  Disable via cast_label_to_bf16 for soft labels.
    if cast_label_to_bf16 and label2.dtype.itemsize > 2:
        label2 = label2.astype(jnp.bfloat16)

    b_tile = n if n < 8 else 8

    dense = (k % 128 == 0) and (k >= 128)
    if dense:
        # Zero-copy repack of each row into lane-dense (R, 128) vreg rows.
        r_total = k // 128
        pred_in = pred2.reshape(n, r_total, 128)
        label_in = label2.reshape(n, r_total, 128)
        if r_total <= 8:
            r_blk = r_total
        else:
            cap = max(8, _round_down(target_block_elems // (b_tile * 128), 8))
            r_blk = min(_round_down(r_total, 8), cap)
        row_steps = pl.cdiv(r_total, r_blk)
        blk1, valid_limit = r_blk, r_total
        row_elems = r_blk * 128
    else:
        # k not 128-aligned: read the flat (n, k) rows directly (no padded copy);
        # the ragged tail of the last K block is masked inside the kernel.
        pred_in, label_in = pred2, label2
        cap = max(128, _round_down(target_block_elems // b_tile, 128))
        k_blk = k if k <= cap else cap
        row_steps = pl.cdiv(k, k_blk)
        blk1, valid_limit = k_blk, k
        row_elems = k_blk

    # Small rows: fold more batch rows into each block so per-step DMAs stay large
    # (amortizes the ~0.35 us/step pipeline overhead).
    if n >= 8 and row_steps == 1:
        while (b_tile * 2 <= n and b_tile * row_elems < target_block_elems
               and b_tile < 1024):
            b_tile *= 2
    nb = pl.cdiv(n, b_tile)

    # v7x megacore: if the batch axis cannot feed two TensorCores, split the
    # reduction axis into two "parallel" halves and add them in the wrapper.
    n_splits = 2 if (nb == 1 and row_steps >= 2) else 1
    sps = pl.cdiv(row_steps, n_splits)

    lane_out = 128 if dense else 1
    if dense:
        in_block = (b_tile, blk1, 128)
        in_map = lambda i, c, j: (i, c * sps + j, 0)
    else:
        in_block = (b_tile, blk1)
        in_map = lambda i, c, j: (i, c * sps + j)
    out_block = (1, b_tile, lane_out)
    out_map = lambda i, c, j: (c, i, 0)

    kernel = functools.partial(
        _bce_kernel,
        ignore_label=float(ignore_label),
        from_sigmoid=from_sigmoid,
        steps_per_split=sps,
        blk1=blk1,
        valid_limit=valid_limit,
    )

    # VMEM: 2 inputs x 2 pipeline buffers x block, plus headroom for the f32
    # upcast / loss temporaries Mosaic may materialize, plus the tiny output.
    blk_elems = b_tile * row_elems
    in_bytes = 2 * blk_elems * (pred_in.dtype.itemsize + label_in.dtype.itemsize)
    tmp_bytes = 4 * 4 * blk_elems
    vmem_limit = int(min(34 << 20, max(in_bytes + tmp_bytes + (2 << 20), 16 << 20)))

    partials = pl.pallas_call(
        kernel,
        out_shape=jax.ShapeDtypeStruct((n_splits, n, lane_out), jnp.float32),
        grid_spec=pltpu.PrefetchScalarGridSpec(
            num_scalar_prefetch=0,
            grid=(nb, n_splits, sps),
            in_specs=[pl.BlockSpec(in_block, in_map),
                      pl.BlockSpec(in_block, in_map)],
            out_specs=pl.BlockSpec(out_block, out_map),
        ),
        compiler_params=pltpu.CompilerParams(
            # CORRECTNESS NOTE: the accumulator pattern relies on (a) the reduction
            # axis (axis 2) being the innermost, sequential "arbitrary" axis and
            # (b) the output block index depending only on (i, c).  Do not reorder
            # the grid or mark axis 2 as parallel.
            dimension_semantics=("parallel", "parallel", "arbitrary"),
            vmem_limit_bytes=vmem_limit,
        ),
    )(pred_in, label_in)

    # Tiny finalize: fold reduction-split halves and lane partials, then apply
    # weight / K once (torch.mean divides by C*H*W, not by the unmasked count).
    return jnp.sum(partials, axis=(0, 2)) * jnp.float32(float(weight) / float(k))


if __name__ == "__main__":
    def reference(pred, label, ignore_label=-1, weight=1.0):
        nb_ = pred.shape[0]
        p = pred.reshape(nb_, -1).astype(jnp.float32)
        l = label.reshape(nb_, -1).astype(jnp.float32)
        m = l != ignore_label
        l = jnp.where(m, l, 0.0)
        loss = jnp.maximum(p, 0.0) - p * l + jnp.log1p(jnp.exp(-jnp.abs(p)))
        loss = weight * (loss * m.astype(jnp.float32))
        return jnp.mean(loss, axis=1)

    def make_inputs(key, shape):
        kp, kl, km = jax.random.split(key, 3)
        pred = jax.random.normal(kp, shape, dtype=jnp.float32)
        label = jax.random.bernoulli(kl, 0.5, shape).astype(jnp.float32)
        label = jnp.where(jax.random.bernoulli(km, 0.1, shape),
                          jnp.float32(-1.0), label)
        return pred, label

    cases = [
        (2, 4, 16, 16),     # k = 1024 : dense path, single step
        (2, 3, 10, 17),     # k = 510  : ragged (non-128-aligned) path, zero-copy
        (9, 1, 24, 80),     # k = 1920 : dense path, ragged R tail + ragged batch
        (16, 1, 8, 16),     # k = 128  : tiny rows -> batch-row folding
        (2, 1, 512, 513),   # k = 262656: dense, multi-step -> reduction core-split
    ]
    keys = jax.random.split(jax.random.PRNGKey(0), len(cases))
    for kk, shape in zip(keys, cases):
        pred, label = make_inputs(kk, shape)
        out = jax.block_until_ready(sigmoid_bce_loss(pred, label))
        ref = reference(pred, label)
        assert out.shape == (shape[0],), (out.shape, shape)
        assert jnp.allclose(out, ref, atol=1e-5, rtol=1e-4), (shape, out, ref)

    print("KERNEL_OK")
</pallas_src>

<mosaic_0001>
module attributes {stable_mosaic.version = 11 : i64} {
  func.func @_bce_kernel(%arg0: i32, %arg1: i32, %arg2: i32, %arg3: memref<2x8x128xf32, #tpu.memory_space<vmem>>, %arg4: memref<2x8x128xbf16, #tpu.memory_space<vmem>>, %arg5: memref<1x2x128xf32, #tpu.memory_space<vmem>>) attributes {dimension_semantics = [#tpu.dimension_semantics<parallel>, #tpu.dimension_semantics<parallel>, #tpu.dimension_semantics<arbitrary>], iteration_bounds = array<i64: 1, 1, 1>, scalar_prefetch = 0 : i64, scratch_operands = 0 : i64, tpu.core_type = #tpu.core_type<tc>, window_params = [{transform_indices = @transform_0, window_bounds = array<i64: 2, 8, 128>}, {transform_indices = @transform_1, window_bounds = array<i64: 2, 8, 128>}, {transform_indices = @transform_2, window_bounds = array<i64: 1, 2, 128>}]} {
    %c0_i32 = arith.constant 0 : i32
    %0 = arith.cmpi eq, %arg2, %c0_i32 : i32
    %1 = arith.extui %0 : i1 to i32
    %c0_i32_0 = arith.constant 0 : i32
    %2 = arith.cmpi ne, %1, %c0_i32_0 : i32
    scf.if %2 {
      %cst_18 = arith.constant 0.000000e+00 : f32
      %35 = vector.broadcast %cst_18 : f32 to vector<1x2x128xf32>
      %c0_19 = arith.constant 0 : index
      %c0_20 = arith.constant 0 : index
      %c0_21 = arith.constant 0 : index
      %36 = vector.load %arg5[%c0_19, %c0_20, %c0_21] : memref<1x2x128xf32, #tpu.memory_space<vmem>>, vector<1x2x128xf32>
      tpu.vector_store %arg5[%c0_19, %c0_20, %c0_21], %35 {strides = array<i32>} : memref<1x2x128xf32, #tpu.memory_space<vmem>>, vector<1x2x128xf32>,
    } else {
    }
    %c0 = arith.constant 0 : index
    %c0_1 = arith.constant 0 : index
    %c0_2 = arith.constant 0 : index
    %3 = vector.load %arg3[%c0, %c0_1, %c0_2] : memref<2x8x128xf32, #tpu.memory_space<vmem>>, vector<2x8x128xf32>
    %c0_3 = arith.constant 0 : index
    %c0_4 = arith.constant 0 : index
    %c0_5 = arith.constant 0 : index
    %4 = vector.load %arg4[%c0_3, %c0_4, %c0_5] : memref<2x8x128xbf16, #tpu.memory_space<vmem>>, vector<2x8x128xbf16>
    %5 = arith.extf %4 : vector<2x8x128xbf16> to vector<2x8x128xf32>
    %c1_i32 = arith.constant 1 : i32
    %6 = arith.muli %arg1, %c1_i32 : i32
    %7 = arith.addi %6, %arg2 : i32
    %c8_i32 = arith.constant 8 : i32
    %8 = arith.muli %7, %c8_i32 : i32
    %c8_i32_6 = arith.constant 8 : i32
    %9 = arith.subi %c8_i32_6, %8 : i32
    %10 = tpu.iota {dimensions = array<i32: 1>} : vector<2x8x128xi32>
    %11 = vector.broadcast %9 : i32 to vector<2x8x128xi32>
    %12 = arith.cmpi slt, %10, %11 : vector<2x8x128xi32>
    %cst = arith.constant -1.000000e+00 : f32
    %13 = vector.broadcast %cst : f32 to vector<2x8x128xf32>
    %14 = arith.cmpf one, %5, %13 : vector<2x8x128xf32>
    %15 = arith.andi %12, %14 : vector<2x8x128xi1>
    %cst_7 = arith.constant 0.000000e+00 : f32
    %16 = vector.broadcast %cst_7 : f32 to vector<2x8x128xf32>
    %17 = arith.select %15, %5, %16 : vector<2x8x128xi1>, vector<2x8x128xf32>
    %cst_8 = arith.constant 0.000000e+00 : f32
    %18 = vector.broadcast %cst_8 : f32 to vector<2x8x128xf32>
    %19 = arith.maximumf %3, %18 : vector<2x8x128xf32>
    %20 = arith.mulf %3, %17 : vector<2x8x128xf32>
    %21 = arith.subf %19, %20 : vector<2x8x128xf32>
    %22 = math.absf %3 : vector<2x8x128xf32>
    %cst_9 = arith.constant 0.000000e+00 : f32
    %23 = vector.broadcast %cst_9 : f32 to vector<2x8x128xf32>
    %24 = arith.subf %23, %22 : vector<2x8x128xf32>
    %25 = math.exp %24 : vector<2x8x128xf32>
    %26 = math.log1p %25 : vector<2x8x128xf32>
    %27 = arith.addf %21, %26 : vector<2x8x128xf32>
    %cst_10 = arith.constant 0.000000e+00 : f32
    %28 = vector.broadcast %cst_10 : f32 to vector<2x8x128xf32>
    %29 = arith.select %15, %27, %28 : vector<2x8x128xi1>, vector<2x8x128xf32>
    %cst_11 = arith.constant dense<0.000000e+00> : vector<2x128xf32>
    %30 = vector.multi_reduction <add>, %29, %cst_11 [1] : vector<2x8x128xf32> to vector<2x128xf32>
    %c0_12 = arith.constant 0 : index
    %c0_13 = arith.constant 0 : index
    %c0_14 = arith.constant 0 : index
    %31 = vector.load %arg5[%c0_12, %c0_13, %c0_14] : memref<1x2x128xf32, #tpu.memory_space<vmem>>, vector<1x2x128xf32>
    %32 = vector.shape_cast %30 : vector<2x128xf32> to vector<1x2x128xf32>
    %33 = arith.addf %31, %32 : vector<1x2x128xf32>
    %c0_15 = arith.constant 0 : index
    %c0_16 = arith.constant 0 : index
    %c0_17 = arith.constant 0 : index
    %34 = vector.load %arg5[%c0_15, %c0_16, %c0_17] : memref<1x2x128xf32, #tpu.memory_space<vmem>>, vector<1x2x128xf32>
    tpu.vector_store %arg5[%c0_15, %c0_16, %c0_17], %33 {strides = array<i32>} : memref<1x2x128xf32, #tpu.memory_space<vmem>>, vector<1x2x128xf32>,
    return
  }
  func.func @transform_0(%arg0: i32, %arg1: i32, %arg2: i32) -> (i32, i32, i32) {
    %c1_i32 = arith.constant 1 : i32
    %0 = arith.muli %arg1, %c1_i32 : i32
    %1 = arith.addi %0, %arg2 : i32
    %c0_i32 = arith.constant 0 : i32
    %c0_i32_0 = arith.constant 0 : i32
    return %arg0, %1, %c0_i32 : i32, i32, i32
  }
  func.func @transform_1(%arg0: i32, %arg1: i32, %arg2: i32) -> (i32, i32, i32) {
    %c1_i32 = arith.constant 1 : i32
    %0 = arith.muli %arg1, %c1_i32 : i32
    %1 = arith.addi %0, %arg2 : i32
    %c0_i32 = arith.constant 0 : i32
    %c0_i32_0 = arith.constant 0 : i32
    return %arg0, %1, %c0_i32 : i32, i32, i32
  }
  func.func @transform_2(%arg0: i32, %arg1: i32, %arg2: i32) -> (i32, i32, i32) {
    %c0_i32 = arith.constant 0 : i32
    %c0_i32_0 = arith.constant 0 : i32
    return %arg1, %arg0, %c0_i32 : i32, i32, i32
  }
}

</mosaic_0001>

<llo_original>
// kernel: tpu_custom_call.1
$region0: #{tpu_custom_call.1}
  #allocation0 [shape = 'u32[]', space=smem, size = 0x4, offset = 0x4, fixed_abs, tag = 'smem constant byte address 0x4 - core index']
  #allocation1 [shape = 'u32[144,128]{1,0:T(1,128)}', space=vmem, size = 0x12000, scoped, tag = 'internal scratch']
  %s0 = inlined_call_operand.hbm [shape: f32[2,8,128], index: 0, kind: input, shape index: {}]
  %s1 = inlined_call_operand.hbm [shape: bf16[2,8,128], index: 1, kind: input, shape index: {}]
  %s2 = inlined_call_operand.hbm [shape: f32[1,2,128], index: 2, kind: output, shape index: {}]
  %s3 = sld [smem:[#allocation0]]
  $region30: #{tpu_custom_call.1} parent=0
    _
  %s5 = ssub.s32 1, %s3
  %s6 = scalar_select 0, %s5, %s3
  $region1: #{tpu_custom_call.1} parent=0
    #allocation2 [shape = 'u8[8192]{0}', space=vmem, size = 0x2000, scoped, tag = 'input window, operand 0, single buffered']
    #allocation3 [shape = 's32[1]{0}', space=sflag, size = 0x4, scoped, tag = 'scoped memory for tpu_custom_call.1']
    #allocation4 [shape = 's32[1]{0}', space=sflag, size = 0x4, scoped, tag = 'scoped memory for tpu_custom_call.1']
    #allocation5 [shape = 'u8[4096]{0}', space=vmem, size = 0x1000, scoped, tag = 'input window, operand 1, single buffered']
    #allocation6 [shape = 's32[1]{0}', space=sflag, size = 0x4, scoped, tag = 'scoped memory for tpu_custom_call.1']
    #allocation7 [shape = 'u8[1024]{0}', space=vmem, size = 0x400, scoped, tag = 'output window, operand 0, single buffered']
    %7 = vsyncpa [#allocation3], 0
    %8 = vsyncpa [#allocation6], 0
    %9 = vsyncpa [#allocation4], 0
    // Predicated region
    $region2: #{tpu_custom_call.1} parent=1 // pred_check
      _
    $region3: #{tpu_custom_call.1} parent=1 // pred_check_branch
      %11 = sbr.rel (0) target = $region5
    $region4: #{tpu_custom_call.1} parent=1 // pred_region
      %s12 = sadd.s32 0, 0
      %s14 = ssub.s32 256, 256
      %15 = vsyncadd [#allocation3], %s14
      %s16 = smul.addr %s12, 128
      %s17 = scalar_lea.hbm %s0, %s16
      %s18 = sshll.u32 [#allocation2], 4
      %s19 = int_to_ptr.vmem [resolvable:$true] %s18
      %24 = dma.hbm_to_vmem [thread:$0]  %s17, 256, %s19, [#allocation3], 128, 128, 8
    $region5: #{tpu_custom_call.1} parent=1 // pred_fallthru
      _
    // Predicated region
    $region6: #{tpu_custom_call.1} parent=1 // pred_check
      _
    $region7: #{tpu_custom_call.1} parent=1 // pred_check_branch
      %26 = sbr.rel (0) target = $region9
    $region8: #{tpu_custom_call.1} parent=1 // pred_region
      %s27 = sadd.s32 0, 0
      %s29 = ssub.s32 128, 128
      %30 = vsyncadd [#allocation6], %s29
      %s31 = smul.addr %s27, 64
      %s32 = scalar_lea.hbm %s1, %s31
      %s33 = sshll.u32 [#allocation5], 4
      %s34 = int_to_ptr.vmem [resolvable:$true] %s33
      %39 = dma.hbm_to_vmem [thread:$0]  %s32, 128, %s34, [#allocation6], 64, 64, 4
    $region9: #{tpu_custom_call.1} parent=1 // pred_fallthru
      _
    // Predicated region
    $region10: #{tpu_custom_call.1} parent=1 // pred_check
      _
    $region11: #{tpu_custom_call.1} parent=1 // pred_check_branch
      %41 = sbr.rel (0) target = $region13
    $region12: #{tpu_custom_call.1} parent=1 // pred_region
      %42 = dma.done [#allocation3], 256
    $region13: #{tpu_custom_call.1} parent=1 // pred_fallthru
      _
    // Predicated region
    $region14: #{tpu_custom_call.1} parent=1 // pred_check
      _
    $region15: #{tpu_custom_call.1} parent=1 // pred_check_branch
      %44 = sbr.rel (0) target = $region17
    $region16: #{tpu_custom_call.1} parent=1 // pred_region
      %45 = dma.done [#allocation6], 128
    $region17: #{tpu_custom_call.1} parent=1 // pred_fallthru
      _
    %s46 = sadd.s32 0, 0
    %s47 = sadd.s32 0, 0
    %p48 = scmp.eq.s32.totalorder 0, 0
    // Predicated region
    $region18: #{tpu_custom_call.1} parent=1 // pred_check
      %p49 = pneg %p48
    $region19: #{tpu_custom_call.1} parent=1 // pred_check_branch
      %51 = sbr.rel (%p49) target = $region21
    $region20: #{tpu_custom_call.1} parent=1 // pred_region
      %52 = vst [vmem:[#allocation7] sm:$0x3] 0.0
    $region21: #{tpu_custom_call.1} parent=1 // pred_fallthru
      _
    %v53 = vld [vmem:[#allocation2] sm:$0xff]
    %v54 = vld [vmem:[#allocation2 + $0x8] sm:$0xff]
    %v55 = vld [vmem:[#allocation5] sm:$0xf]
    %v56 = vld [vmem:[#allocation5 + $0x4] sm:$0xf]
    %v57 = vunpack.c.l.bf16 %v55
    %v58 = vunpack.c.l.bf16 %v56
    %s59 = sadd.s32 0, 0
    %s60 = smul.u32 %s59, 8
    %s61 = ssub.s32 8, %s60
    %v62 = vlaneseq
    %v63 = vshrl.u32 %v62, 7
    %v64 = vstv %s61
    %vm65 = vcmp.lt.s32.totalorder %v63, %v64
    %vm66 = vcmp.ne.f32.partialorder %v57, -1.0
    %vm67 = vcmp.ne.f32.partialorder %v58, -1.0
    %vm68 = vmand %vm65, %vm66
    %vm69 = vmand %vm65, %vm67
    %v70 = vsel %vm68, %v57, 0.0
    %v71 = vsel %vm69, %v58, 0.0
    %v72 = vmax.f32 %v53, 0.0
    %v73 = vmax.f32 %v54, 0.0
    %v74 = vmul.f32 %v53, %v70
    %v75 = vmul.f32 %v54, %v71
    %v76 = vsub.f32 %v72, %v74
    %v77 = vsub.f32 %v73, %v75
    %v78 = vand.u32 2147483647, %v53
    %v79 = vand.u32 2147483647, %v54
    %v80 = vsub.f32 0.0, %v78
    %v81 = vsub.f32 0.0, %v79
    %v82 = vmul.f32 %v80, 1.442695
    %v83 = vpow.pop %v82
    %v84 = vmul.f32 %v81, 1.442695
    %v85 = vpow.pop %v84
    %v86 = vadd.f32 %v83, 1.0
    %v87 = vlog2.pop %v86
    %v88 = vmul.f32 %v87, 0.6931472
    %v89 = vmul.f32 -0.5, %v83
    %v90 = vadd.f32 %v89, 1.0
    %v91 = vmul.f32 %v90, %v83
    %v92 = vand.u32 2147483647, %v83
    %vm93 = vcmp.lt.f32.partialorder %v92, 0.0004427343
    %v94 = vsel %vm93, %v91, %v88
    %v95 = vadd.f32 %v85, 1.0
    %v96 = vlog2.pop %v95
    %v97 = vmul.f32 %v96, 0.6931472
    %v98 = vmul.f32 -0.5, %v85
    %v99 = vadd.f32 %v98, 1.0
    %v100 = vmul.f32 %v99, %v85
    %v101 = vand.u32 2147483647, %v85
    %vm102 = vcmp.lt.f32.partialorder %v101, 0.0004427343
    %v103 = vsel %vm102, %v100, %v97
    %v104 = vadd.f32 %v76, %v94
    %v105 = vadd.f32 %v77, %v103
    %v106 = vsel %vm68, %v104, 0.0
    %v107 = vsel %vm69, %v105, 0.0
    %v108 = vrot.slane %v106, 4
    %v109 = vadd.f32 %v106, %v108
    %v110 = vrot.slane %v109, 2
    %v111 = vadd.f32 %v109, %v110
    %v112 = vrot.slane %v111, 1
    %v113 = vadd.f32 %v111, %v112
    %v114 = vrot.slane %v107, 4
    %v115 = vadd.f32 %v107, %v114
    %v116 = vrot.slane %v115, 2
    %v117 = vadd.f32 %v115, %v116
    %v118 = vrot.slane %v117, 1
    %v119 = vadd.f32 %v117, %v118
    %v120 = vld [vmem:[#allocation7] sm:$0x3]
    %vm123 = vcmask 1041409
    %v124 = vsel %vm123, %v119, %v113
    %v126 = vadd.f32 %v120, %v124
    %127 = vst [vmem:[#allocation7] sm:$0x3] %v126
    // Predicated region
    $region22: #{tpu_custom_call.1} parent=1 // pred_check
      _
    $region23: #{tpu_custom_call.1} parent=1 // pred_check_branch
      %129 = sbr.rel (0) target = $region25
    $region24: #{tpu_custom_call.1} parent=1 // pred_region
      %s131 = ssub.s32 32, 32
      %132 = vsyncadd [#allocation4], %s131
      %s134 = sshll.u32 [#allocation7], 4
      %s135 = int_to_ptr.vmem [resolvable:$true] %s134
      %137 = dma.vmem_to_hbm [thread:$0]  %s135, 32, %s2, [#allocation4]
    $region25: #{tpu_custom_call.1} parent=1 // pred_fallthru
      _
    // Predicated region
    $region26: #{tpu_custom_call.1} parent=1 // pred_check
      _
    $region27: #{tpu_custom_call.1} parent=1 // pred_check_branch
      %139 = sbr.rel (0) target = $region29
    $region28: #{tpu_custom_call.1} parent=1 // pred_region
      %140 = dma.done [#allocation4], 32
    $region29: #{tpu_custom_call.1} parent=1 // pred_fallthru
      _
    %141 = vsyncpa [#allocation3], 1
    %142 = vsyncpa [#allocation6], 1
    %143 = vsyncpa [#allocation4], 1

</llo_original>
